<compile_context>
chip_gen: v7x
topology: tpu7x:2x2x1
jax: 0.10.0
libtpu: 0.0.40
codegen_flags: <defaults>
</compile_context>

<pallas_src>
import jax
import jax.numpy as jnp
from jax.experimental import pallas as pl
from jax.experimental.pallas import tpu as pltpu


def _make_attention_kernel(return_attn, exp_bf16):
    def kernel(w1_ref, w2_ref, b_ref, q_ref, c_ref, out_ref, *attn_refs):
        q = q_ref[...]                # (Bblk, T, D) bf16 (pre-cast in wrapper)
        c = c_ref[...]                # (Bblk, S, D) bf16
        w1 = w1_ref[...]              # (D, D) bf16  == weight[:, :D].T
        w2 = w2_ref[...]              # (D, D) bf16  == weight[:, D:].T
        b = b_ref[...]                # (1, D) f32

        # scores[b] = output[b] @ context[b]^T : contract on D, batch on B.
        # (Tiny D/T/S underfill the MXU, but production dims >= 128 use it
        #  well; a VPU broadcast-mul path would pay XLU lane reductions.)
        scores = jax.lax.dot_general(
            q, c,
            dimension_numbers=(((2,), (2,)), ((0,), (0,))),
            preferred_element_type=jnp.float32)             # (Bblk, T, S) f32

        # TODO(synk): optional self.mask (masked_fill_ with -inf) not applied;
        # the module's mask is None by default.

        # Softmax over the context axis in f32; divide goes to the EUP.
        m = jnp.max(scores, axis=-1, keepdims=True)
        centered = scores - m
        if exp_bf16:
            # v6e/v7x: bf16 EUP exp ~2x throughput; small accuracy cost.
            e = jnp.exp(centered.astype(jnp.bfloat16)).astype(jnp.float32)
        else:
            e = jnp.exp(centered)
        denom = jnp.sum(e, axis=-1, keepdims=True)
        attn = e * pl.reciprocal(denom, approx=True)        # (Bblk, T, S) f32

        # mix[b] = attn[b] @ context[b]
        mix = jax.lax.dot_general(
            attn.astype(jnp.bfloat16), c,
            dimension_numbers=(((2,), (1,)), ((0,), (0,))),
            preferred_element_type=jnp.float32)             # (Bblk, T, D) f32

        # linear_out(cat(mix, output)) == mix @ w1 + output @ w2 + b.
        # Kept as batched dot_generals: no concat, no in-kernel reshape.
        lin = (jax.lax.dot_general(
                   mix.astype(jnp.bfloat16), w1,
                   dimension_numbers=(((2,), (0,)), ((), ())),
                   preferred_element_type=jnp.float32)
               + jax.lax.dot_general(
                   q, w2,
                   dimension_numbers=(((2,), (0,)), ((), ())),
                   preferred_element_type=jnp.float32)
               + b[None])                                   # (Bblk, T, D) f32

        out_ref[...] = jnp.tanh(lin).astype(out_ref.dtype)
        if return_attn:
            attn_refs[0][...] = attn.astype(attn_refs[0].dtype)

    return kernel


def prepare_attention_params(weight, bias):
    """Hoist per-call weight prep (do this once per model, not per step):
    split linear_out's (D, 2D) weight so cat(mix, output) @ W.T
    == mix @ w1 + output @ w2, pre-cast to bf16 for the MXU."""
    D = weight.shape[0]
    assert weight.shape == (D, 2 * D) and bias.shape == (D,)
    w1 = jnp.asarray(weight[:, :D].T, dtype=jnp.bfloat16)   # (D, D)
    w2 = jnp.asarray(weight[:, D:].T, dtype=jnp.bfloat16)   # (D, D)
    b2d = jnp.asarray(bias, dtype=jnp.float32).reshape(1, D)
    return w1, w2, b2d


def _vmem_capacity_bytes():
    try:
        info = pltpu.get_tpu_info()
        cap = getattr(info, "vmem_capacity_bytes", None)
        if cap:
            return int(cap)
    except Exception:
        pass
    return 64 * 1024 * 1024   # v7x per-TC worst case


def _choose_block_b(B, T, S, D, vmem_bytes, return_attn, min_steps=4):
    """Largest divisor of B that (a) keeps the double-buffered per-step tiles
    within ~half of VMEM and (b) leaves >= min(B, min_steps) grid steps for
    pipelining / v7x megacore sharding."""
    in_bytes = (T * D + S * D) * 2                      # bf16 inputs
    out_bytes = T * D * 4 + (T * S * 2 if return_attn else 0)
    tmp_bytes = (2 * T * S + 2 * T * D) * 4             # scores/e + mix/lin f32
    per_b = 2 * (in_bytes + out_bytes) + tmp_bytes      # x2 = double buffering
    budget = vmem_bytes // 2
    cap_vmem = max(1, budget // max(per_b, 1))
    cap_steps = max(1, B // min(B, min_steps))
    cap = max(1, min(B, cap_vmem, cap_steps))
    bb = 1
    for d in range(1, cap + 1):
        if B % d == 0:
            bb = d
    return bb


def attention_forward(output, context, params, *, block_b=None,
                      attn_dtype=jnp.bfloat16, return_attn=True,
                      exp_bf16=False):
    """output: (B,T,D) decoder states, context: (B,S,D) encoder states,
    params = prepare_attention_params(weight, bias).
    Returns (result (B,T,D) f32, attn (B,T,S) attn_dtype), or just result
    when return_attn=False."""
    w1, w2, b2d = params
    B, T, D = output.shape
    _, S, _ = context.shape
    assert w1.shape == (D, D) and w2.shape == (D, D) and b2d.shape == (1, D)

    vmem_bytes = _vmem_capacity_bytes()
    if block_b is None:
        block_b = _choose_block_b(B, T, S, D, vmem_bytes, return_attn)
    assert B % block_b == 0, "block_b must divide B"
    n_steps = B // block_b

    # bf16 MXU inputs cast once here (halves input DMA bytes / VMEM tiles).
    q_bf = output.astype(jnp.bfloat16)
    c_bf = context.astype(jnp.bfloat16)

    in_specs = [
        pl.BlockSpec((D, D), lambda i: (0, 0)),              # w1 (shared)
        pl.BlockSpec((D, D), lambda i: (0, 0)),              # w2 (shared)
        pl.BlockSpec((1, D), lambda i: (0, 0)),              # bias (shared)
        pl.BlockSpec((block_b, T, D), lambda i: (i, 0, 0)),  # output (bf16)
        pl.BlockSpec((block_b, S, D), lambda i: (i, 0, 0)),  # context (bf16)
    ]
    res_spec = pl.BlockSpec((block_b, T, D), lambda i: (i, 0, 0))
    res_shape = jax.ShapeDtypeStruct((B, T, D), jnp.float32)
    if return_attn:
        out_specs = [res_spec,
                     pl.BlockSpec((block_b, T, S), lambda i: (i, 0, 0))]
        out_shape = (res_shape, jax.ShapeDtypeStruct((B, T, S), attn_dtype))
    else:
        out_specs = res_spec
        out_shape = res_shape

    # Explicit VMEM budget (v7x physical VMEM = 64 MiB; scoped default 32 MiB)
    # with headroom for weights, double-buffered tiles and f32 temporaries.
    weight_bytes = 2 * D * D * 2 + D * 4
    step_bytes = block_b * (2 * ((T * D + S * D) * 2 + T * D * 4 + T * S * 2)
                            + (2 * T * S + 2 * T * D) * 4)
    vmem_limit = int(min(0.9 * vmem_bytes,
                         max(32 * 1024 * 1024,
                             weight_bytes + step_bytes + 4 * 1024 * 1024)))

    kernel = _make_attention_kernel(return_attn, exp_bf16)
    return pl.pallas_call(
        kernel,
        out_shape=out_shape,
        grid_spec=pltpu.PrefetchScalarGridSpec(
            num_scalar_prefetch=0,
            grid=(n_steps,),
            in_specs=in_specs,
            out_specs=out_specs,
        ),
        compiler_params=pltpu.CompilerParams(
            dimension_semantics=("parallel",),
            vmem_limit_bytes=vmem_limit),
    )(w1, w2, b2d, q_bf, c_bf)


if __name__ == "__main__":
    key = jax.random.PRNGKey(0)
    B, T, S, D = 2, 8, 8, 32   # batch, out_len, in_len (seq), hidden dim

    k1, k2, k3, k4 = jax.random.split(key, 4)
    output = jax.random.normal(k1, (B, T, D), dtype=jnp.float32)
    context = jax.random.normal(k2, (B, S, D), dtype=jnp.float32)
    # nn.Linear(dim*2, dim): weight (D, 2D), bias (D,)
    weight = jax.random.normal(k3, (D, 2 * D), dtype=jnp.float32) * 0.1
    bias = jax.random.normal(k4, (D,), dtype=jnp.float32) * 0.1

    params = prepare_attention_params(weight, bias)   # hoisted: once per model
    out, attn = attention_forward(output, context, params)
    jax.block_until_ready((out, attn))

    # Reference with the same bf16-matmul / f32-accumulation numerics as the
    # kernel (the bf16 MXU path intentionally deviates from pure-f32 math;
    # attn is returned in bf16 and rows sum to 1 only approximately due to
    # the approx EUP reciprocal).
    ob = output.astype(jnp.bfloat16)
    cb = context.astype(jnp.bfloat16)
    scores = jnp.einsum("btd,bsd->bts", ob, cb,
                        preferred_element_type=jnp.float32)
    ref_attn = jax.nn.softmax(scores, axis=-1)
    mix = jnp.einsum("bts,bsd->btd", ref_attn.astype(jnp.bfloat16), cb,
                     preferred_element_type=jnp.float32)
    combined = jnp.concatenate([mix, output], axis=-1).astype(jnp.bfloat16)
    ref_out = jnp.tanh(
        jnp.einsum("btk,dk->btd", combined, weight.astype(jnp.bfloat16),
                   preferred_element_type=jnp.float32) + bias)

    assert jnp.allclose(attn.astype(jnp.float32), ref_attn,
                        atol=1e-2, rtol=1e-2), "attn mismatch"
    assert jnp.allclose(out, ref_out, atol=2e-2, rtol=2e-2), "output mismatch"

    print("KERNEL_OK")
</pallas_src>

<mosaic_0001>
module attributes {stable_mosaic.version = 11 : i64} {
  func.func @kernel(%arg0: i32, %arg1: memref<32x32xbf16, #tpu.memory_space<vmem>>, %arg2: memref<32x32xbf16, #tpu.memory_space<vmem>>, %arg3: memref<1x32xf32, #tpu.memory_space<vmem>>, %arg4: memref<1x8x32xbf16, #tpu.memory_space<vmem>>, %arg5: memref<1x8x32xbf16, #tpu.memory_space<vmem>>, %arg6: memref<1x8x32xf32, #tpu.memory_space<vmem>>, %arg7: memref<1x8x8xbf16, #tpu.memory_space<vmem>>) attributes {dimension_semantics = [#tpu.dimension_semantics<parallel>], iteration_bounds = array<i64: 2>, scalar_prefetch = 0 : i64, scratch_operands = 0 : i64, tpu.core_type = #tpu.core_type<tc>, window_params = [{pipeline_mode = #tpu.pipeline_mode<synchronous>, transform_indices = @transform_0, window_bounds = array<i64: 32, 32>}, {pipeline_mode = #tpu.pipeline_mode<synchronous>, transform_indices = @transform_1, window_bounds = array<i64: 32, 32>}, {pipeline_mode = #tpu.pipeline_mode<synchronous>, transform_indices = @transform_2, window_bounds = array<i64: 1, 32>}, {transform_indices = @transform_3, window_bounds = array<i64: 1, 8, 32>}, {transform_indices = @transform_4, window_bounds = array<i64: 1, 8, 32>}, {transform_indices = @transform_5, window_bounds = array<i64: 1, 8, 32>}, {transform_indices = @transform_6, window_bounds = array<i64: 1, 8, 8>}]} {
    %c0 = arith.constant 0 : index
    %c0_0 = arith.constant 0 : index
    %c0_1 = arith.constant 0 : index
    %0 = vector.load %arg4[%c0, %c0_0, %c0_1] : memref<1x8x32xbf16, #tpu.memory_space<vmem>>, vector<1x8x32xbf16>
    %c0_2 = arith.constant 0 : index
    %c0_3 = arith.constant 0 : index
    %c0_4 = arith.constant 0 : index
    %1 = vector.load %arg5[%c0_2, %c0_3, %c0_4] : memref<1x8x32xbf16, #tpu.memory_space<vmem>>, vector<1x8x32xbf16>
    %c0_5 = arith.constant 0 : index
    %c0_6 = arith.constant 0 : index
    %2 = vector.load %arg1[%c0_5, %c0_6] : memref<32x32xbf16, #tpu.memory_space<vmem>>, vector<32x32xbf16>
    %c0_7 = arith.constant 0 : index
    %c0_8 = arith.constant 0 : index
    %3 = vector.load %arg2[%c0_7, %c0_8] : memref<32x32xbf16, #tpu.memory_space<vmem>>, vector<32x32xbf16>
    %c0_9 = arith.constant 0 : index
    %c0_10 = arith.constant 0 : index
    %4 = vector.load %arg3[%c0_9, %c0_10] : memref<1x32xf32, #tpu.memory_space<vmem>>, vector<1x32xf32>
    %cst = arith.constant dense<0.000000e+00> : vector<1x8x8xf32>
    %5 = tpu.matmul %0, %1, %cst {dimension_numbers = #tpu.dot_dimension_numbers<[2], [2], [1], [1], [0, 0, 0, 1, 1, 1], [0], [0]>} : vector<1x8x32xbf16>, vector<1x8x32xbf16>, vector<1x8x8xf32> -> vector<1x8x8xf32>
    %cst_11 = arith.constant dense<0xFF800000> : vector<1x8xf32>
    %6 = vector.multi_reduction <maximumf>, %5, %cst_11 [2] : vector<1x8x8xf32> to vector<1x8xf32>
    %7 = vector.shape_cast %6 : vector<1x8xf32> to vector<1x8x1xf32>
    %8 = vector.broadcast %7 : vector<1x8x1xf32> to vector<1x8x8xf32>
    %9 = arith.subf %5, %8 : vector<1x8x8xf32>
    %10 = math.exp %9 : vector<1x8x8xf32>
    %cst_12 = arith.constant dense<0.000000e+00> : vector<1x8xf32>
    %11 = vector.multi_reduction <add>, %10, %cst_12 [2] : vector<1x8x8xf32> to vector<1x8xf32>
    %12 = vector.shape_cast %11 : vector<1x8xf32> to vector<1x8x1xf32>
    %13 = tpu.reciprocal %12 {approx = true} : vector<1x8x1xf32> -> vector<1x8x1xf32>
    %14 = vector.broadcast %13 : vector<1x8x1xf32> to vector<1x8x8xf32>
    %15 = arith.mulf %10, %14 : vector<1x8x8xf32>
    %16 = arith.truncf %15 : vector<1x8x8xf32> to vector<1x8x8xbf16>
    %cst_13 = arith.constant dense<0.000000e+00> : vector<1x8x32xf32>
    %17 = tpu.matmul %16, %1, %cst_13 {dimension_numbers = #tpu.dot_dimension_numbers<[2], [1], [1], [2], [0, 0, 0, 1, 1, 2], [0], [0]>} : vector<1x8x8xbf16>, vector<1x8x32xbf16>, vector<1x8x32xf32> -> vector<1x8x32xf32>
    %18 = arith.truncf %17 : vector<1x8x32xf32> to vector<1x8x32xbf16>
    %cst_14 = arith.constant dense<0.000000e+00> : vector<1x8x32xf32>
    %19 = tpu.matmul %18, %2, %cst_14 {dimension_numbers = #tpu.dot_dimension_numbers<[2], [0], [0, 1], [1], [0, 0, 0, 1, 1, 1], [], []>} : vector<1x8x32xbf16>, vector<32x32xbf16>, vector<1x8x32xf32> -> vector<1x8x32xf32>
    %cst_15 = arith.constant dense<0.000000e+00> : vector<1x8x32xf32>
    %20 = tpu.matmul %0, %3, %cst_15 {dimension_numbers = #tpu.dot_dimension_numbers<[2], [0], [0, 1], [1], [0, 0, 0, 1, 1, 1], [], []>} : vector<1x8x32xbf16>, vector<32x32xbf16>, vector<1x8x32xf32> -> vector<1x8x32xf32>
    %21 = arith.addf %19, %20 : vector<1x8x32xf32>
    %22 = vector.shape_cast %4 : vector<1x32xf32> to vector<1x1x32xf32>
    %23 = vector.broadcast %22 : vector<1x1x32xf32> to vector<1x8x32xf32>
    %24 = arith.addf %21, %23 : vector<1x8x32xf32>
    %25 = math.tanh %24 : vector<1x8x32xf32>
    %c0_16 = arith.constant 0 : index
    %c0_17 = arith.constant 0 : index
    %c0_18 = arith.constant 0 : index
    %26 = vector.load %arg6[%c0_16, %c0_17, %c0_18] : memref<1x8x32xf32, #tpu.memory_space<vmem>>, vector<1x8x32xf32>
    tpu.vector_store %arg6[%c0_16, %c0_17, %c0_18], %25 {strides = array<i32>} : memref<1x8x32xf32, #tpu.memory_space<vmem>>, vector<1x8x32xf32>,
    %27 = arith.truncf %15 : vector<1x8x8xf32> to vector<1x8x8xbf16>
    %c0_19 = arith.constant 0 : index
    %c0_20 = arith.constant 0 : index
    %c0_21 = arith.constant 0 : index
    %28 = vector.load %arg7[%c0_19, %c0_20, %c0_21] : memref<1x8x8xbf16, #tpu.memory_space<vmem>>, vector<1x8x8xbf16>
    tpu.vector_store %arg7[%c0_19, %c0_20, %c0_21], %27 {strides = array<i32>} : memref<1x8x8xbf16, #tpu.memory_space<vmem>>, vector<1x8x8xbf16>,
    return
  }
  func.func @transform_0(%arg0: i32) -> (i32, i32) {
    %c0_i32 = arith.constant 0 : i32
    %c0_i32_0 = arith.constant 0 : i32
    %c0_i32_1 = arith.constant 0 : i32
    return %c0_i32, %c0_i32_0 : i32, i32
  }
  func.func @transform_1(%arg0: i32) -> (i32, i32) {
    %c0_i32 = arith.constant 0 : i32
    %c0_i32_0 = arith.constant 0 : i32
    %c0_i32_1 = arith.constant 0 : i32
    return %c0_i32, %c0_i32_0 : i32, i32
  }
  func.func @transform_2(%arg0: i32) -> (i32, i32) {
    %c0_i32 = arith.constant 0 : i32
    %c0_i32_0 = arith.constant 0 : i32
    %c0_i32_1 = arith.constant 0 : i32
    return %c0_i32, %c0_i32_0 : i32, i32
  }
  func.func @transform_3(%arg0: i32) -> (i32, i32, i32) {
    %c0_i32 = arith.constant 0 : i32
    %c0_i32_0 = arith.constant 0 : i32
    %c0_i32_1 = arith.constant 0 : i32
    return %arg0, %c0_i32, %c0_i32_0 : i32, i32, i32
  }
  func.func @transform_4(%arg0: i32) -> (i32, i32, i32) {
    %c0_i32 = arith.constant 0 : i32
    %c0_i32_0 = arith.constant 0 : i32
    %c0_i32_1 = arith.constant 0 : i32
    return %arg0, %c0_i32, %c0_i32_0 : i32, i32, i32
  }
  func.func @transform_5(%arg0: i32) -> (i32, i32, i32) {
    %c0_i32 = arith.constant 0 : i32
    %c0_i32_0 = arith.constant 0 : i32
    %c0_i32_1 = arith.constant 0 : i32
    return %arg0, %c0_i32, %c0_i32_0 : i32, i32, i32
  }
  func.func @transform_6(%arg0: i32) -> (i32, i32, i32) {
    %c0_i32 = arith.constant 0 : i32
    %c0_i32_0 = arith.constant 0 : i32
    %c0_i32_1 = arith.constant 0 : i32
    return %arg0, %c0_i32, %c0_i32_0 : i32, i32, i32
  }
}

</mosaic_0001>

<llo_original>
// kernel: tpu_custom_call.1
$region0: #{tpu_custom_call.1}
  #allocation0 [shape = 'u32[]', space=smem, size = 0x4, offset = 0x4, fixed_abs, tag = 'smem constant byte address 0x4 - core index']
  #allocation1 [shape = 'u32[144,128]{1,0:T(1,128)}', space=vmem, size = 0x12000, scoped, tag = 'internal scratch']
  %s0 = inlined_call_operand.hbm [shape: bf16[32,32], index: 0, kind: input, shape index: {}]
  %s1 = inlined_call_operand.hbm [shape: bf16[32,32], index: 1, kind: input, shape index: {}]
  %s2 = inlined_call_operand.vmem [shape: f32[1,32], index: 2, kind: input, shape index: {}]
  %s3 = inlined_call_operand.vmem [shape: bf16[2,8,32], index: 3, kind: input, shape index: {}]
  %s4 = inlined_call_operand.hbm [shape: bf16[2,8,32], index: 4, kind: input, shape index: {}]
  %s5 = inlined_call_operand.hbm [shape: f32[2,8,32], index: 5, kind: output, shape index: {0}]
  %s6 = inlined_call_operand.hbm [shape: bf16[2,8,8], index: 6, kind: output, shape index: {1}]
  %7 = xla_tuple %s5, %s6
  %s8 = sld [smem:[#allocation0]]
  $region73: #{tpu_custom_call.1} parent=0
    _
  %s10 = ssub.s32 1, %s8
  %s11 = scalar_select 0, %s10, %s8
  $region1: #{tpu_custom_call.1} parent=0
    #allocation2 [shape = 'u8[8192]{0}', space=vmem, size = 0x2000, scoped, tag = 'input window, operand 0, single buffered']
    #allocation3 [shape = 's32[2]{0}', space=sflag, size = 0x8, scoped, tag = 'scoped memory for tpu_custom_call.1']
    #allocation4 [shape = 's32[2]{0}', space=sflag, size = 0x8, scoped, tag = 'scoped memory for tpu_custom_call.1']
    #allocation5 [shape = 'u8[8192]{0}', space=vmem, size = 0x2000, scoped, tag = 'input window, operand 1, single buffered']
    #allocation6 [shape = 's32[1]{0}', space=sflag, size = 0x4, scoped, tag = 'scoped memory for tpu_custom_call.1']
    #allocation7 [shape = 'u8[4096]{0}', space=vmem, size = 0x1000, scoped, tag = 'input window, operand 4']
    #allocation8 [shape = 'u8[8192]{0}', space=vmem, size = 0x2000, scoped, tag = 'output window, operand 0']
    #allocation9 [shape = 'u8[4096]{0}', space=vmem, size = 0x1000, scoped, tag = 'output window, operand 1']
    #allocation10 [shape = 's32[2]{0}', space=sflag, size = 0x8, scoped, tag = 'scoped memory for tpu_custom_call.1']
    %12 = vsyncpa [#allocation3], 0
    %13 = vsyncpa [#allocation6], 0
    %14 = vsyncpa [#allocation4], 0
    %s15 = scalar_lea.sflag [#allocation4], 1
    %16 = vsyncpa %s15, 0
    %17 = vsyncpa [#allocation10], 0
    %s18 = scalar_lea.sflag [#allocation10], 1
    %19 = vsyncpa %s18, 0
    loop: start=0, step=1, limit=4
    $region2: #{tpu_custom_call.1} parent=1 // loop_pre_header
      _
    $region3: #{tpu_custom_call.1} parent=1 // loop_header
      %s21 = sphi 0, %s25
      %p22 = scmp.ge.s32.totalorder %s21, 4
      %s29 = sphi 0, %s29
      %s31 = sphi 0, %s29
      %s32 = sphi 0, %s31
      %s46 = sphi 0, %s32
      %s50 = sphi 0, %s50
      %s52 = sphi 0, %s50
      %s53 = sphi 0, %s52
      %s67 = sphi 0, %s53
      %s71 = sphi 0, %s71
      %s73 = sphi 0, %s71
      %s74 = sphi 0, %s73
      %s88 = sphi 0, %s74
      %s94 = sphi 0, %s96
      %s97 = sphi 0, %s94
      %s98 = sphi 0, %s97
      %s114 = sphi 0, %s98
      %s120 = sphi 0, %s122
      %s123 = sphi 0, %s120
      %s124 = sphi 0, %s123
      %s140 = sphi 0, %s124
      %s146 = sphi 0, %s148
      %s149 = sphi 0, %s146
      %s150 = sphi 0, %s149
      %s166 = sphi 0, %s150
      %s172 = sphi 0, %s174
      %s175 = sphi 0, %s172
      %s176 = sphi 0, %s175
      %s192 = sphi 0, %s176
    $region4: #{tpu_custom_call.1} parent=1 // loop_header_branch
      %24 = sbr.rel (%p22) target = $region8
    $region5: #{tpu_custom_call.1} parent=1 // loop_body
      %s26 = ssub.s32 %s21, 1
      %s27 = ssub.s32 %s21, 2
      %s28 = sadd.s32 %s21, 1
      %s30 = sadd.s32 %s29, 1
      %p33 = scmp.eq.s32.totalorder %s21, 1
      %p34 = scmp.ne.s32.totalorder %s29, %s31
      %p35 = scmp.eq.s32.totalorder %s21, 0
      %p36 = por %p34, %p35
      %p37 = scmp.ne.s32.totalorder %s29, %s31
      %p38 = scmp.eq.s32.totalorder %s26, 1
      %p39 = por %p37, %p38
      %p40 = scmp.ne.s32.totalorder %s31, %s32
      %p41 = scmp.eq.s32.totalorder %s26, 0
      %p42 = por %p40, %p41
      %p43 = scmp.ne.s32.totalorder %s31, %s32
      %p44 = scmp.eq.s32.totalorder %s27, 1
      %p45 = por %p43, %p44
      %p47 = scmp.ne.s32.totalorder %s32, %s46
      %p48 = scmp.eq.s32.totalorder %s27, 0
      %p49 = por %p47, %p48
      %s51 = sadd.s32 %s50, 1
      %p54 = scmp.eq.s32.totalorder %s21, 1
      %p55 = scmp.ne.s32.totalorder %s50, %s52
      %p56 = scmp.eq.s32.totalorder %s21, 0
      %p57 = por %p55, %p56
      %p58 = scmp.ne.s32.totalorder %s50, %s52
      %p59 = scmp.eq.s32.totalorder %s26, 1
      %p60 = por %p58, %p59
      %p61 = scmp.ne.s32.totalorder %s52, %s53
      %p62 = scmp.eq.s32.totalorder %s26, 0
      %p63 = por %p61, %p62
      %p64 = scmp.ne.s32.totalorder %s52, %s53
      %p65 = scmp.eq.s32.totalorder %s27, 1
      %p66 = por %p64, %p65
      %p68 = scmp.ne.s32.totalorder %s53, %s67
      %p69 = scmp.eq.s32.totalorder %s27, 0
      %p70 = por %p68, %p69
      %s72 = sadd.s32 %s71, 1
      %p75 = scmp.eq.s32.totalorder %s21, 1
      %p76 = scmp.ne.s32.totalorder %s71, %s73
      %p77 = scmp.eq.s32.totalorder %s21, 0
      %p78 = por %p76, %p77
      %p79 = scmp.ne.s32.totalorder %s71, %s73
      %p80 = scmp.eq.s32.totalorder %s26, 1
      %p81 = por %p79, %p80
      %p82 = scmp.ne.s32.totalorder %s73, %s74
      %p83 = scmp.eq.s32.totalorder %s26, 0
      %p84 = por %p82, %p83
      %p85 = scmp.ne.s32.totalorder %s73, %s74
      %p86 = scmp.eq.s32.totalorder %s27, 1
      %p87 = por %p85, %p86
      %p89 = scmp.ne.s32.totalorder %s74, %s88
      %p90 = scmp.eq.s32.totalorder %s27, 0
      %p91 = por %p89, %p90
      %s92 = ssub.s32 %s21, %s28
      %p93 = scmp.eq.s32.totalorder %s92, 0
      %s95 = sadd.s32 %s94, 1
      %s96 = scalar_select %p93, %s94, %s95
      %p99 = pneg %p93
      %p100 = scmp.eq.s32.totalorder %s21, 1
      %p101 = por %p99, %p100
      %p102 = scmp.ne.s32.totalorder %s94, %s97
      %p103 = scmp.eq.s32.totalorder %s21, 0
      %p104 = por %p102, %p103
      %p105 = scmp.ne.s32.totalorder %s94, %s97
      %p106 = scmp.eq.s32.totalorder %s26, 1
      %p107 = por %p105, %p106
      %p108 = scmp.ne.s32.totalorder %s97, %s98
      %p109 = scmp.eq.s32.totalorder %s26, 0
      %p110 = por %p108, %p109
      %p111 = scmp.ne.s32.totalorder %s97, %s98
      %p112 = scmp.eq.s32.totalorder %s27, 1
      %p113 = por %p111, %p112
      %p115 = scmp.ne.s32.totalorder %s98, %s114
      %p116 = scmp.eq.s32.totalorder %s27, 0
      %p117 = por %p115, %p116
      %s118 = ssub.s32 %s21, %s28
      %p119 = scmp.eq.s32.totalorder %s118, 0
      %s121 = sadd.s32 %s120, 1
      %s122 = scalar_select %p119, %s120, %s121
      %p125 = pneg %p119
      %p126 = scmp.eq.s32.totalorder %s21, 1
      %p127 = por %p125, %p126
      %p128 = scmp.ne.s32.totalorder %s120, %s123
      %p129 = scmp.eq.s32.totalorder %s21, 0
      %p130 = por %p128, %p129
      %p131 = scmp.ne.s32.totalorder %s120, %s123
      %p132 = scmp.eq.s32.totalorder %s26, 1
      %p133 = por %p131, %p132
      %p134 = scmp.ne.s32.totalorder %s123, %s124
      %p135 = scmp.eq.s32.totalorder %s26, 0
      %p136 = por %p134, %p135
      %p137 = scmp.ne.s32.totalorder %s123, %s124
      %p138 = scmp.eq.s32.totalorder %s27, 1
      %p139 = por %p137, %p138
      %p141 = scmp.ne.s32.totalorder %s124, %s140
      %p142 = scmp.eq.s32.totalorder %s27, 0
      %p143 = por %p141, %p142
      %s144 = ssub.s32 %s21, %s28
      %p145 = scmp.eq.s32.totalorder %s144, 0
      %s147 = sadd.s32 %s146, 1
      %s148 = scalar_select %p145, %s146, %s147
      %p151 = pneg %p145
      %p152 = scmp.eq.s32.totalorder %s21, 1
      %p153 = por %p151, %p152
      %p154 = scmp.ne.s32.totalorder %s146, %s149
      %p155 = scmp.eq.s32.totalorder %s21, 0
      %p156 = por %p154, %p155
      %p157 = scmp.ne.s32.totalorder %s146, %s149
      %p158 = scmp.eq.s32.totalorder %s26, 1
      %p159 = por %p157, %p158
      %p160 = scmp.ne.s32.totalorder %s149, %s150
      %p161 = scmp.eq.s32.totalorder %s26, 0
      %p162 = por %p160, %p161
      %p163 = scmp.ne.s32.totalorder %s149, %s150
      %p164 = scmp.eq.s32.totalorder %s27, 1
      %p165 = por %p163, %p164
      %p167 = scmp.ne.s32.totalorder %s150, %s166
      %p168 = scmp.eq.s32.totalorder %s27, 0
      %p169 = por %p167, %p168
      %s170 = ssub.s32 %s21, %s28
      %p171 = scmp.eq.s32.totalorder %s170, 0
      %s173 = sadd.s32 %s172, 1
      %s174 = scalar_select %p171, %s172, %s173
      %p177 = pneg %p171
      %p178 = scmp.eq.s32.totalorder %s21, 1
      %p179 = por %p177, %p178
      %p180 = scmp.ne.s32.totalorder %s172, %s175
      %p181 = scmp.eq.s32.totalorder %s21, 0
      %p182 = por %p180, %p181
      %p183 = scmp.ne.s32.totalorder %s172, %s175
      %p184 = scmp.eq.s32.totalorder %s26, 1
      %p185 = por %p183, %p184
      %p186 = scmp.ne.s32.totalorder %s175, %s176
      %p187 = scmp.eq.s32.totalorder %s26, 0
      %p188 = por %p186, %p187
      %p189 = scmp.ne.s32.totalorder %s175, %s176
      %p190 = scmp.eq.s32.totalorder %s27, 1
      %p191 = por %p189, %p190
      %p193 = scmp.ne.s32.totalorder %s176, %s192
      %p194 = scmp.eq.s32.totalorder %s27, 0
      %p195 = por %p193, %p194
      %p196 = scmp.le.s32.totalorder 1, %s21
      %p197 = scmp.lt.s32.totalorder %s21, 3
      %p198 = pnand %p196, %p197
      %p199 = pneg %p198
      // Predicated region
      $region9: #{tpu_custom_call.1} parent=5 // pred_check
        _
      $region10: #{tpu_custom_call.1} parent=5 // pred_check_branch
        %201 = sbr.rel (%p198) target = $region12
      $region11: #{tpu_custom_call.1} parent=5 // pred_region
        %s202 = ssub.s32 %s21, 1
        // Predicated region
        $region13: #{tpu_custom_call.1} parent=11 // pred_check
          %p203 = pneg %p42
        $region14: #{tpu_custom_call.1} parent=11 // pred_check_branch
          %205 = sbr.rel (%p203) target = $region16
        $region15: #{tpu_custom_call.1} parent=11 // pred_region
          %s207 = ssub.s32 256, 256
          %208 = vsyncadd [#allocation3], %s207
          %s209 = sshll.u32 [#allocation2], 4
          %s210 = int_to_ptr.vmem [resolvable:$true] %s209
          %215 = dma.hbm_to_vmem [thread:$0]  %s0, 256, %s210, [#allocation3], 64, 64, 4
        $region16: #{tpu_custom_call.1} parent=11 // pred_fallthru
          _
        // Predicated region
        $region17: #{tpu_custom_call.1} parent=11 // pred_check
          %p216 = pneg %p63
        $region18: #{tpu_custom_call.1} parent=11 // pred_check_branch
          %218 = sbr.rel (%p216) target = $region20
        $region19: #{tpu_custom_call.1} parent=11 // pred_region
          %s220 = ssub.s32 256, 256
          %221 = vsyncadd [#allocation6], %s220
          %s222 = sshll.u32 [#allocation5], 4
          %s223 = int_to_ptr.vmem [resolvable:$true] %s222
          %228 = dma.hbm_to_vmem [thread:$0]  %s1, 256, %s223, [#allocation6], 64, 64, 4
        $region20: #{tpu_custom_call.1} parent=11 // pred_fallthru
          _
        // Predicated region
        $region21: #{tpu_custom_call.1} parent=11 // pred_check
          %p229 = pneg %p84
        $region22: #{tpu_custom_call.1} parent=11 // pred_check_branch
          %231 = sbr.rel (%p229) target = $region24
        $region23: #{tpu_custom_call.1} parent=11 // pred_region
          _
        $region24: #{tpu_custom_call.1} parent=11 // pred_fallthru
          _
      $region12: #{tpu_custom_call.1} parent=5 // pred_fallthru
        _
      %p232 = scmp.lt.s32.totalorder %s21, 2
      // Predicated region
      $region25: #{tpu_custom_call.1} parent=5 // pred_check
        %p233 = pneg %p232
      $region26: #{tpu_custom_call.1} parent=5 // pred_check_branch
        %235 = sbr.rel (%p233) target = $region28
      $region27: #{tpu_custom_call.1} parent=5 // pred_region
        // Predicated region
        $region29: #{tpu_custom_call.1} parent=27 // pred_check
          %p236 = pneg %p104
        $region30: #{tpu_custom_call.1} parent=27 // pred_check_branch
          %238 = sbr.rel (%p236) target = $region32
        $region31: #{tpu_custom_call.1} parent=27 // pred_region
          %p239 = scmp.lt.s32.totalorder %s21, 1
          %s240 = scalar_select %p239, %s21, 1
          %s241 = smul.addr %s240, 4
          %s242 = scalar_lea.vmem %s3, %s241
        $region32: #{tpu_custom_call.1} parent=27 // pred_fallthru
          _
        // Predicated region
        $region33: #{tpu_custom_call.1} parent=27 // pred_check
          %p243 = pneg %p130
        $region34: #{tpu_custom_call.1} parent=27 // pred_check_branch
          %245 = sbr.rel (%p243) target = $region36
        $region35: #{tpu_custom_call.1} parent=27 // pred_region
          %s246 = sand.u32 %s21, 1
          %s247 = scalar_lea.sflag [#allocation3], %s246
          %s248 = sand.u32 %s120, 1
          %s249 = smul.addr %s248, 4
          %s250 = scalar_lea.vmem [#allocation7], %s249
          %s252 = ssub.s32 64, 64
          %253 = vsyncadd %s247, %s252
          %s254 = smul.addr %s21, 64
          %s255 = scalar_lea.hbm %s4, %s254
          %s257 = sshll.u32 %s250, 4
          %s258 = int_to_ptr.vmem [resolvable:$true] %s257
          %260 = dma.hbm_to_vmem [thread:$0]  %s255, 64, %s258, %s247
        $region36: #{tpu_custom_call.1} parent=27 // pred_fallthru
          _
      $region28: #{tpu_custom_call.1} parent=5 // pred_fallthru
        _
      %p261 = scmp.le.s32.totalorder 1, %s21
      %p262 = scmp.lt.s32.totalorder %s21, 3
      %p263 = pnand %p261, %p262
      %p264 = pneg %p263
      // Predicated region
      $region37: #{tpu_custom_call.1} parent=5 // pred_check
        _
      $region38: #{tpu_custom_call.1} parent=5 // pred_check_branch
        %266 = sbr.rel (%p263) target = $region40
      $region39: #{tpu_custom_call.1} parent=5 // pred_region
        %s267 = ssub.s32 %s21, 1
        // Predicated region
        $region41: #{tpu_custom_call.1} parent=39 // pred_check
          %p268 = pneg %p42
        $region42: #{tpu_custom_call.1} parent=39 // pred_check_branch
          %270 = sbr.rel (%p268) target = $region44
        $region43: #{tpu_custom_call.1} parent=39 // pred_region
          %271 = dma.done [#allocation3], 256
        $region44: #{tpu_custom_call.1} parent=39 // pred_fallthru
          _
        // Predicated region
        $region45: #{tpu_custom_call.1} parent=39 // pred_check
          %p272 = pneg %p63
        $region46: #{tpu_custom_call.1} parent=39 // pred_check_branch
          %274 = sbr.rel (%p272) target = $region48
        $region47: #{tpu_custom_call.1} parent=39 // pred_region
          %275 = dma.done [#allocation6], 256
        $region48: #{tpu_custom_call.1} parent=39 // pred_fallthru
          _
        %s276 = sand.u32 %s26, 1
        %s277 = scalar_lea.sflag [#allocation3], %s276
        %s278 = sand.u32 %s123, 1
        %s279 = smul.addr %s278, 4
        %s280 = scalar_lea.vmem [#allocation7], %s279
        // Predicated region
        $region49: #{tpu_custom_call.1} parent=39 // pred_check
          %p281 = pneg %p136
        $region50: #{tpu_custom_call.1} parent=39 // pred_check_branch
          %283 = sbr.rel (%p281) target = $region52
        $region51: #{tpu_custom_call.1} parent=39 // pred_region
          %284 = dma.done %s277, 64
        $region52: #{tpu_custom_call.1} parent=39 // pred_fallthru
          _
        %p285 = pneg %p42
        %p286 = pneg %p39
        %p287 = pneg %p63
        %p288 = pneg %p60
        %p289 = pneg %p84
        %p290 = pneg %p81
        %p291 = scmp.lt.s32.totalorder %s26, 1
        %s292 = scalar_select %p291, %s26, 1
        %s293 = smul.addr %s292, 4
        %s294 = scalar_lea.vmem %s3, %s293
        %p295 = pneg %p110
        %p296 = pneg %p107
        %s297 = sand.u32 %s26, 1
        %s298 = scalar_lea.sflag [#allocation3], %s297
        %s299 = sand.u32 %s123, 1
        %s300 = smul.addr %s299, 4
        %s301 = scalar_lea.vmem [#allocation7], %s300
        %p302 = pneg %p136
        %p303 = pneg %p133
        %p304 = pneg %p162
        %p305 = pneg %p159
        %s306 = sand.u32 %s149, 1
        %s307 = scalar_lea.sflag [#allocation4], %s306
        %s308 = sand.u32 %s149, 1
        %s309 = smul.addr %s308, 8
        %s310 = scalar_lea.vmem [#allocation8], %s309
        %p311 = pneg %p188
        %p312 = pneg %p185
        %s313 = sand.u32 %s175, 1
        %s314 = scalar_lea.sflag [#allocation10], %s313
        %s315 = sand.u32 %s175, 1
        %s316 = smul.addr %s315, 4
        %s317 = scalar_lea.vmem [#allocation9], %s316
        %p318 = scmp.lt.s32.totalorder %s26, 1
        %s319 = scalar_select %p318, %s26, 1
        %s320 = smul.addr %s319, 4
        %s321 = scalar_lea.vmem %s3, %s320
        %v323 = vld [vmem:[%s321] sm:$0xf]
        %v324 = vld [vmem:[%s280] sm:$0xf]
        %v325 = vld [vmem:[#allocation2] sm:$0xf]
        %v326 = vld [vmem:[#allocation2 + $0x4] sm:$0xf]
        %v327 = vld [vmem:[#allocation2 + $0x8] sm:$0xf]
        %v328 = vld [vmem:[#allocation2 + $0xc] sm:$0xf]
        %v329 = vld [vmem:[#allocation5] sm:$0xf]
        %v330 = vld [vmem:[#allocation5 + $0x4] sm:$0xf]
        %v331 = vld [vmem:[#allocation5 + $0x8] sm:$0xf]
        %v332 = vld [vmem:[#allocation5 + $0xc] sm:$0xf]
        %v333 = vld [vmem:[%s2] sm:$0x1]
        %vm334 = vcmask 261120
        %v336 = vsel %vm334, %v323, 0
        %v339 = vsel %vm334, %v324, 0
        %341 = vmatprep.subr.bf16.mxu0 0
        %342 = vmatpush1.bf16.xpose.msra.mxu0 %v339
        %343 = vmatprep.subr.bf16.mxu0 0
        %344 = vmatpush1.bf16.xpose.msra.mxu0 0
        %345 = vmatprep.subr.bf16.mxu0 0
        %346 = vmatpush1.bf16.xpose.msra.mxu0 0
        %347 = vmatprep.subr.bf16.mxu0 0
        %348 = vmatpush1.bf16.xpose.msra.mxu0 0
        %349 = vmatprep.subr.bf16.mxu0 0
        %350 = vmatpush1.bf16.xpose.msra.mxu0 0
        %351 = vmatprep.subr.bf16.mxu0 0
        %352 = vmatpush1.bf16.xpose.msra.mxu0 0
        %353 = vmatprep.subr.bf16.mxu0 0
        %354 = vmatpush1.bf16.xpose.msra.mxu0 0
        %355 = vmatprep.subr.bf16.mxu0 0
        %356 = vmatpush1.bf16.xpose.msra.mxu0 0
        %357 = vmatprep.subr.bf16.mxu0 0
        %358 = vmatpush1.bf16.xpose.msra.mxu0 0
        %359 = vmatprep.subr.bf16.mxu0 0
        %360 = vmatpush1.bf16.xpose.msra.mxu0 0
        %361 = vmatprep.subr.bf16.mxu0 0
        %362 = vmatpush1.bf16.xpose.msra.mxu0 0
        %363 = vmatprep.subr.bf16.mxu0 0
        %364 = vmatpush1.bf16.xpose.msra.mxu0 0
        %365 = vmatprep.subr.bf16.mxu0 0
        %366 = vmatpush1.bf16.xpose.msra.mxu0 0
        %367 = vmatprep.subr.bf16.mxu0 0
        %368 = vmatpush1.bf16.xpose.msra.mxu0 0
        %369 = vmatprep.subr.bf16.mxu0 0
        %370 = vmatpush1.bf16.xpose.msra.mxu0 0
        %371 = vmatprep.subr.bf16.mxu0 0
        %372 = vmatpush1.bf16.xpose.msra.mxu0 0
        %373 = vmatprep.mubr.bf16.mxu0 0
        %374 = vmatmul.mubr.bf16.gmra.mrb[0].mxu0 %v336
        %v375 = vpop.f32.mrb[0].mxu0
        %v376 = vadd.f32 0.0, %v375
        %v377 = vpop.f32.mrb[0].mxu0
        %v378 = vpop.f32.mrb[0].mxu0
        %v379 = vpop.f32.mrb[0].mxu0
        %380 = vdwg.mxu0
        %vm381 = vcmask 64512
        %v382 = vsel %vm381, %v376, -inf
        %383 = vmax.xlane.f32.xlu0 %v382
        %v384 = vpop.xlane.xlu0 %383
        %v385 = vsub.f32 %v376, %v384
        %v386 = vmul.f32 %v385, 1.442695
        %v387 = vpow.pop %v386
        %v388 = vsel %vm381, %v387, 0.0
        %389 = vadd.xlane.f32.xlu0 %v388
        %v390 = vpop.xlane.xlu0 %389
        %v391 = vrcp.pop %v390
        %v392 = vmul.f32 %v387, %v391
        %v393 = vpack.c.bf16 %v392, %v392
        %v395 = vsel %vm381, %v393, 0
        %vm397 = vcmask 1043456
        %v398 = vsel %vm397, %v324, 0
        %400 = vmatprep.subr.bf16.mxu0 0
        %401 = vmatpush1.bf16.msra.mxu0 %v398
        %402 = vmatprep.subr.bf16.mxu0 0
        %403 = vmatpush1.bf16.msra.mxu0 0
        %404 = vmatprep.subr.bf16.mxu0 0
        %405 = vmatpush1.bf16.msra.mxu0 0
        %406 = vmatprep.subr.bf16.mxu0 0
        %407 = vmatpush1.bf16.msra.mxu0 0
        %408 = vmatprep.subr.bf16.mxu0 0
        %409 = vmatpush1.bf16.msra.mxu0 0
        %410 = vmatprep.subr.bf16.mxu0 0
        %411 = vmatpush1.bf16.msra.mxu0 0
        %412 = vmatprep.subr.bf16.mxu0 0
        %413 = vmatpush1.bf16.msra.mxu0 0
        %414 = vmatprep.subr.bf16.mxu0 0
        %415 = vmatpush1.bf16.msra.mxu0 0
        %416 = vmatprep.subr.bf16.mxu0 0
        %417 = vmatpush1.bf16.msra.mxu0 0
        %418 = vmatprep.subr.bf16.mxu0 0
        %419 = vmatpush1.bf16.msra.mxu0 0
        %420 = vmatprep.subr.bf16.mxu0 0
        %421 = vmatpush1.bf16.msra.mxu0 0
        %422 = vmatprep.subr.bf16.mxu0 0
        %423 = vmatpush1.bf16.msra.mxu0 0
        %424 = vmatprep.subr.bf16.mxu0 0
        %425 = vmatpush1.bf16.msra.mxu0 0
        %426 = vmatprep.subr.bf16.mxu0 0
        %427 = vmatpush1.bf16.msra.mxu0 0
        %428 = vmatprep.subr.bf16.mxu0 0
        %429 = vmatpush1.bf16.msra.mxu0 0
        %430 = vmatprep.subr.bf16.mxu0 0
        %431 = vmatpush1.bf16.msra.mxu0 0
        %432 = vmatprep.mubr.bf16.mxu0 0
        %433 = vmatmul.mubr.bf16.gmra.mrb[0].mxu0 %v395
        %v434 = vpop.f32.mrb[0].mxu0
        %v435 = vadd.f32 0.0, %v434
        %v436 = vpop.f32.mrb[0].mxu0
        %v437 = vpop.f32.mrb[0].mxu0
        %v438 = vpop.f32.mrb[0].mxu0
        %439 = vdwg.mxu0
        %v440 = vpack.c.bf16 %v435, %v435
        %v445 = vunpack.c.l.b16 %v329
        %v446 = vunpack.c.l.b16 %v330
        %v447 = vunpack.c.l.b16 %v331
        %v448 = vunpack.c.l.b16 %v332
        %v449 = vpack.c.b16 %v446, %v445
        %v450 = vpack.c.b16 %v448, %v447
        %453 = vmatprep.subr.bf16.mxu0 0
        %454 = vmatpush1.bf16.msra.mxu0 %v449
        %455 = vmatprep.subr.bf16.mxu0 0
        %456 = vmatpush1.bf16.msra.mxu0 %v450
        %457 = vmatprep.subr.bf16.mxu0 0
        %458 = vmatpush1.bf16.msra.mxu0 0
        %459 = vmatprep.subr.bf16.mxu0 0
        %460 = vmatpush1.bf16.msra.mxu0 0
        %461 = vmatprep.subr.bf16.mxu0 0
        %462 = vmatpush1.bf16.msra.mxu0 0
        %463 = vmatprep.subr.bf16.mxu0 0
        %464 = vmatpush1.bf16.msra.mxu0 0
        %465 = vmatprep.subr.bf16.mxu0 0
        %466 = vmatpush1.bf16.msra.mxu0 0
        %467 = vmatprep.subr.bf16.mxu0 0
        %468 = vmatpush1.bf16.msra.mxu0 0
        %469 = vmatprep.subr.bf16.mxu0 0
        %470 = vmatpush1.bf16.msra.mxu0 0
        %471 = vmatprep.subr.bf16.mxu0 0
        %472 = vmatpush1.bf16.msra.mxu0 0
        %473 = vmatprep.subr.bf16.mxu0 0
        %474 = vmatpush1.bf16.msra.mxu0 0
        %475 = vmatprep.subr.bf16.mxu0 0
        %476 = vmatpush1.bf16.msra.mxu0 0
        %477 = vmatprep.subr.bf16.mxu0 0
        %478 = vmatpush1.bf16.msra.mxu0 0
        %479 = vmatprep.subr.bf16.mxu0 0
        %480 = vmatpush1.bf16.msra.mxu0 0
        %481 = vmatprep.subr.bf16.mxu0 0
        %482 = vmatpush1.bf16.msra.mxu0 0
        %483 = vmatprep.subr.bf16.mxu0 0
        %484 = vmatpush1.bf16.msra.mxu0 0
        %485 = vmatprep.mubr.bf16.mxu0 0
        %486 = vmatmul.mubr.bf16.gmra.mrb[0].mxu0 %v336
        %v487 = vpop.f32.mrb[0].mxu0
        %v488 = vadd.f32 0.0, %v487
        %v489 = vpop.f32.mrb[0].mxu0
        %v490 = vpop.f32.mrb[0].mxu0
        %v491 = vpop.f32.mrb[0].mxu0
        %492 = vdwg.mxu0
        %v497 = vunpack.c.l.b16 %v325
        %v498 = vunpack.c.l.b16 %v326
        %v499 = vunpack.c.l.b16 %v327
        %v500 = vunpack.c.l.b16 %v328
        %v501 = vpack.c.b16 %v498, %v497
        %v502 = vpack.c.b16 %v500, %v499
        %v506 = vsel %vm334, %v440, 0
        %508 = vmatprep.subr.bf16.mxu0 0
        %509 = vmatpush1.bf16.msra.mxu0 %v501
        %510 = vmatprep.subr.bf16.mxu0 0
        %511 = vmatpush1.bf16.msra.mxu0 %v502
        %512 = vmatprep.subr.bf16.mxu0 0
        %513 = vmatpush1.bf16.msra.mxu0 0
        %514 = vmatprep.subr.bf16.mxu0 0
        %515 = vmatpush1.bf16.msra.mxu0 0
        %516 = vmatprep.subr.bf16.mxu0 0
        %517 = vmatpush1.bf16.msra.mxu0 0
        %518 = vmatprep.subr.bf16.mxu0 0
        %519 = vmatpush1.bf16.msra.mxu0 0
        %520 = vmatprep.subr.bf16.mxu0 0
        %521 = vmatpush1.bf16.msra.mxu0 0
        %522 = vmatprep.subr.bf16.mxu0 0
        %523 = vmatpush1.bf16.msra.mxu0 0
        %524 = vmatprep.subr.bf16.mxu0 0
        %525 = vmatpush1.bf16.msra.mxu0 0
        %526 = vmatprep.subr.bf16.mxu0 0
        %527 = vmatpush1.bf16.msra.mxu0 0
        %528 = vmatprep.subr.bf16.mxu0 0
        %529 = vmatpush1.bf16.msra.mxu0 0
        %530 = vmatprep.subr.bf16.mxu0 0
        %531 = vmatpush1.bf16.msra.mxu0 0
        %532 = vmatprep.subr.bf16.mxu0 0
        %533 = vmatpush1.bf16.msra.mxu0 0
        %534 = vmatprep.subr.bf16.mxu0 0
        %535 = vmatpush1.bf16.msra.mxu0 0
        %536 = vmatprep.subr.bf16.mxu0 0
        %537 = vmatpush1.bf16.msra.mxu0 0
        %538 = vmatprep.subr.bf16.mxu0 0
        %539 = vmatpush1.bf16.msra.mxu0 0
        %540 = vmatprep.mubr.bf16.mxu0 0
        %541 = vmatmul.mubr.bf16.gmra.mrb[0].mxu0 %v506
        %v542 = vpop.f32.mrb[0].mxu0
        %v543 = vadd.f32 %v488, %v542
        %v544 = vpop.f32.mrb[0].mxu0
        %v545 = vpop.f32.mrb[0].mxu0
        %v546 = vpop.f32.mrb[0].mxu0
        %547 = vdwg.mxu0
        %v549 = vlaneseq
        %v550 = vshrl.u32 %v549, 7
        %v551 = vsub.s32 0, %v550
        %v552 = vrot.slane %v333, %v551
        %v554 = vadd.f32 %v543, %v552
        %v555 = vtanh.pop %v554
        %556 = vst.msk [vmem:[%s310] sm:$0xff] %vm334, %v555
        %vm557 = vcmask 60416
        %558 = vst.msk [vmem:[%s317] sm:$0xf] %vm557, %v393
        %s559 = sand.u32 %s149, 1
        %s560 = scalar_lea.sflag [#allocation4], %s559
        %s561 = sand.u32 %s149, 1
        %s562 = smul.addr %s561, 8
        %s563 = scalar_lea.vmem [#allocation8], %s562
        %s564 = sand.u32 %s175, 1
        %s565 = scalar_lea.sflag [#allocation10], %s564
        %s566 = sand.u32 %s175, 1
        %s567 = smul.addr %s566, 4
        %s568 = scalar_lea.vmem [#allocation9], %s567
        // Predicated region
        $region53: #{tpu_custom_call.1} parent=39 // pred_check
          %p569 = pneg %p159
        $region54: #{tpu_custom_call.1} parent=39 // pred_check_branch
          %571 = sbr.rel (%p569) target = $region56
        $region55: #{tpu_custom_call.1} parent=39 // pred_region
          %s573 = ssub.s32 128, 128
          %574 = vsyncadd %s560, %s573
          %s575 = smul.addr %s26, 128
          %s576 = scalar_lea.hbm %s5, %s575
          %s578 = sshll.u32 %s563, 4
          %s579 = int_to_ptr.vmem [resolvable:$true] %s578
          %581 = dma.vmem_to_hbm [thread:$0]  %s579, 128, %s576, %s560
        $region56: #{tpu_custom_call.1} parent=39 // pred_fallthru
          _
        // Predicated region
        $region57: #{tpu_custom_call.1} parent=39 // pred_check
          %p582 = pneg %p185
        $region58: #{tpu_custom_call.1} parent=39 // pred_check_branch
          %584 = sbr.rel (%p582) target = $region60
        $region59: #{tpu_custom_call.1} parent=39 // pred_region
          %s586 = ssub.s32 64, 64
          %587 = vsyncadd %s565, %s586
          %s588 = smul.addr %s26, 64
          %s589 = scalar_lea.hbm %s6, %s588
          %s591 = sshll.u32 %s568, 4
          %s592 = int_to_ptr.vmem [resolvable:$true] %s591
          %594 = dma.vmem_to_hbm [thread:$0]  %s592, 64, %s589, %s565
        $region60: #{tpu_custom_call.1} parent=39 // pred_fallthru
          _
      $region40: #{tpu_custom_call.1} parent=5 // pred_fallthru
        _
      %p595 = scmp.le.s32.totalorder 2, %s21
      // Predicated region
      $region61: #{tpu_custom_call.1} parent=5 // pred_check
        %p596 = pneg %p595
      $region62: #{tpu_custom_call.1} parent=5 // pred_check_branch
        %598 = sbr.rel (%p596) target = $region64
      $region63: #{tpu_custom_call.1} parent=5 // pred_region
        %s599 = ssub.s32 %s21, 2
        // Predicated region
        $region65: #{tpu_custom_call.1} parent=63 // pred_check
          %p600 = pneg %p165
        $region66: #{tpu_custom_call.1} parent=63 // pred_check_branch
          %602 = sbr.rel (%p600) target = $region68
        $region67: #{tpu_custom_call.1} parent=63 // pred_region
          %s603 = sand.u32 %s150, 1
          %s604 = scalar_lea.sflag [#allocation4], %s603
          %s605 = sand.u32 %s150, 1
          %s606 = smul.addr %s605, 8
          %s607 = scalar_lea.vmem [#allocation8], %s606
          %608 = dma.done %s604, 128
        $region68: #{tpu_custom_call.1} parent=63 // pred_fallthru
          _
        // Predicated region
        $region69: #{tpu_custom_call.1} parent=63 // pred_check
          %p609 = pneg %p191
        $region70: #{tpu_custom_call.1} parent=63 // pred_check_branch
          %611 = sbr.rel (%p609) target = $region72
        $region71: #{tpu_custom_call.1} parent=63 // pred_region
          %s612 = sand.u32 %s176, 1
          %s613 = scalar_lea.sflag [#allocation10], %s612
          %s614 = sand.u32 %s176, 1
          %s615 = smul.addr %s614, 4
          %s616 = scalar_lea.vmem [#allocation9], %s615
          %617 = dma.done %s613, 64
        $region72: #{tpu_custom_call.1} parent=63 // pred_fallthru
          _
      $region64: #{tpu_custom_call.1} parent=5 // pred_fallthru
        _
    $region6: #{tpu_custom_call.1} parent=1 // loop_footer
      %s25 = sadd.s32 1, %s21
    $region7: #{tpu_custom_call.1} parent=1 // loop_footer_branch
      %20 = sbr.rel target = $region3
    $region8: #{tpu_custom_call.1} parent=1 // loop_exit
      _
    %618 = vsyncpa [#allocation3], 1
    %s619 = scalar_lea.sflag [#allocation3], 1
    %620 = vsyncpa %s619, 1
    %621 = vsyncpa [#allocation6], 1
    %622 = vsyncpa [#allocation4], 1
    %s623 = scalar_lea.sflag [#allocation4], 1
    %624 = vsyncpa %s623, 1
    %625 = vsyncpa [#allocation10], 1
    %s626 = scalar_lea.sflag [#allocation10], 1
    %627 = vsyncpa %s626, 1

</llo_original>
